<compile_context>
chip_gen: v6e
topology: v6e:2x2x1
jax: 0.10.0
libtpu: 0.0.40
codegen_flags: <defaults>
</compile_context>

<pallas_src>
from functools import partial

import jax
import jax.numpy as jnp
from jax.experimental import pallas as pl
from jax.experimental.pallas import tpu as pltpu


def channel_attention_kernel(x_ref, w1t_ref, w2t_ref, o_ref, psum_ref, pmax_ref,
                             *, hw, tile_hw, bn, n_chunks):
    """Shapes seen by the kernel:
         x_ref   : (1, bn, C, tile_hw)  current spatial chunk (native dtype)
         w1t_ref : (C, Cr) == W1^T      w2t_ref : (Cr, C) == W2^T
         o_ref   : (1, bn, C)           attention weights for this batch block
         psum_ref / pmax_ref : (bn, C, 128) f32 partial-sum / partial-max scratch
    """
    k = pl.program_id(1)
    last = n_chunks - 1

    @pl.when(k == 0)
    def _init():
        psum_ref[...] = jnp.zeros(psum_ref.shape, psum_ref.dtype)
        pmax_ref[...] = jnp.full(pmax_ref.shape, -jnp.inf, pmax_ref.dtype)

    # ---- static slice plan --------------------------------------------------
    # Walk the chunk in 128-lane sub-slices so only one slice is ever live in
    # f32 (no full-tile f32 materialization / vreg spill at large tile_hw).
    def chunk_slices():
        out, off = [], 0
        while off < tile_hw:
            w = min(128, tile_hw - off)
            out.append((off, w))
            off += w
        return out

    def accumulate(off, w, mask_limit=None):
        xs = x_ref[0, :, :, pl.ds(off, w)].astype(jnp.float32)   # (bn, C, w)
        if mask_limit is None:
            xs_sum, xs_max = xs, xs
        else:
            lane = jax.lax.broadcasted_iota(jnp.int32, xs.shape, 2)
            valid = lane < mask_limit
            xs_sum = jnp.where(valid, xs, 0.0)
            xs_max = jnp.where(valid, xs, -jnp.inf)
        if w == 128:
            psum_ref[...] += xs_sum
            pmax_ref[...] = jnp.maximum(pmax_ref[...], xs_max)
        else:
            # Narrow trailing slice (only when tile_hw == HW and HW % 128 != 0);
            # accumulate into the first w lanes of the partial accumulators.
            sl = pl.ds(0, w)
            psum_ref[:, :, sl] += xs_sum
            pmax_ref[:, :, sl] = jnp.maximum(pmax_ref[:, :, sl], xs_max)

    slices = chunk_slices()
    rem = hw - (n_chunks - 1) * tile_hw     # valid lanes in the last chunk
    needs_tail_mask = rem != tile_hw

    if not needs_tail_mask:
        # Every chunk is fully in-bounds: completely unmasked accumulation.
        for off, w in slices:
            accumulate(off, w)
    else:
        @pl.when(k < last)
        def _full_chunks():
            for off, w in slices:
                accumulate(off, w)

        @pl.when(k == last)
        def _tail_chunk():
            # Per-slice validity is fully static here (k == last is known).
            for off, w in slices:
                if off >= rem:
                    continue                           # fully OOB: never read
                if off + w <= rem:
                    accumulate(off, w)                 # fully valid: no mask
                else:
                    accumulate(off, w, mask_limit=rem - off)   # partial slice

    # ---- finalize: pooled stats -> shared 2-layer MLP -> sigmoid ------------
    @pl.when(k == last)
    def _finalize():
        avg = jnp.sum(psum_ref[...], axis=-1) * (1.0 / hw)       # (bn, C)
        mx = jnp.max(pmax_ref[...], axis=-1)                     # (bn, C)
        # One matmul per layer over the stacked (avg, max) operand; feed the
        # weights' native dtype (bf16 weights stay bf16 on the MXU).
        pooled = jnp.concatenate([avg, mx], axis=0).astype(w1t_ref.dtype)
        h = jnp.maximum(
            jnp.dot(pooled, w1t_ref[...], preferred_element_type=jnp.float32),
            0.0)
        y = jnp.dot(h.astype(w2t_ref.dtype), w2t_ref[...],
                    preferred_element_type=jnp.float32)           # (2*bn, C)
        out = y[:bn] + y[bn:]
        o_ref[0] = jax.nn.sigmoid(out).astype(o_ref.dtype)


def _vmem_capacity_bytes():
    """Physical VMEM per TensorCore; conservative (v7x) fallback if the query
    is unavailable."""
    try:
        return int(pltpu.get_tpu_info().vmem_capacity_bytes)
    except Exception:
        return 64 << 20


def _pick_bn(n, max_bn=8):
    """Largest batch block that (a) divides N, (b) keeps >= 2 batch blocks so
    the 'parallel' axis can shard across v7x's two TensorCores, and (c) stays
    <= max_bn to bound scratch / finalize size."""
    if n <= 1:
        return 1
    best = 1
    for d in range(1, min(n // 2, max_bn) + 1):
        if n % d == 0:
            best = d
    return best


def _pick_tile_hw(hw, bn, c, itemsize, tile_hw):
    """Lane-aligned spatial chunk, auto-sized toward ~2 MiB per grid step."""
    max_lanes = 32 * 128            # cap the statically unrolled slice loop
    if tile_hw is None:
        target_bytes = 2 << 20      # HBM-bound sweet spot per grid step
        tile_hw = target_bytes // max(1, bn * c * itemsize)
    want = int(max(128, min(tile_hw, max_lanes)))
    if hw <= want or hw < 128:
        return hw                                   # single chunk == full extent
    return max(128, (min(want, hw) // 128) * 128)   # multiple of 128


def channel_attention(x, w1, w2, *, tile_hw=None):
    """x: (N, C, H, W); w1: (Cr, C) = Conv2d(C, Cr, 1).weight[:, :, 0, 0];
    w2: (C, Cr) = Conv2d(Cr, C, 1).weight[:, :, 0, 0]. Returns (N, C, 1, 1)."""
    N, C, H, W = x.shape
    Cr = w1.shape[0]
    HW = H * W
    itemsize = x.dtype.itemsize

    bn = _pick_bn(N)
    grid_b = N // bn
    t_hw = _pick_tile_hw(HW, bn, C, itemsize, tile_hw)
    grid_k = int(pl.cdiv(HW, t_hw))

    x_blk = x.reshape(grid_b, bn, C, HW)    # contiguous reshape (no copy)
    w1t = w1.T                              # (C, Cr)
    w2t = w2.T                              # (Cr, C)

    # Deeper buffering on the x stream only pays off for deep spatial
    # reductions (many short strided DMA segments per chunk).
    n_buf = 2
    x_spec = pl.BlockSpec((1, bn, C, t_hw), lambda i, k: (i, 0, 0, k))
    if grid_k >= 4:
        try:
            x_spec = pl.BlockSpec((1, bn, C, t_hw), lambda i, k: (i, 0, 0, k),
                                  pipeline_mode=pl.Buffered(3))
            n_buf = 3
        except (TypeError, AttributeError):
            pass  # older JAX: keep default double buffering

    # VMEM request from the actual footprint, capped per-generation
    # (<= 3/4 of physical VMEM: ~48 MiB on v7x, ~96 MiB on v5e/v6e).
    vmem_bytes = int(
        n_buf * bn * C * t_hw * itemsize
        + 2 * (C * Cr + Cr * C) * w1.dtype.itemsize
        + 2 * bn * C * x.dtype.itemsize
        + 2 * bn * C * 128 * 4
        + (2 << 20))
    vmem_bytes = int(min(max(vmem_bytes, 4 << 20),
                         (_vmem_capacity_bytes() * 3) // 4))

    cost = pl.CostEstimate(
        flops=2 * N * C * HW + 2 * (2 * N) * (C * Cr + Cr * C),
        transcendentals=N * C,
        bytes_accessed=N * C * HW * itemsize
        + 2 * C * Cr * w1.dtype.itemsize
        + N * C * itemsize,
    )

    kernel = partial(channel_attention_kernel, hw=HW, tile_hw=t_hw, bn=bn,
                     n_chunks=grid_k)

    out = pl.pallas_call(
        kernel,
        out_shape=jax.ShapeDtypeStruct((grid_b, bn, C), x.dtype),
        grid=(grid_b, grid_k),
        in_specs=[
            x_spec,
            pl.BlockSpec((C, Cr), lambda i, k: (0, 0)),
            pl.BlockSpec((Cr, C), lambda i, k: (0, 0)),
        ],
        out_specs=pl.BlockSpec((1, bn, C), lambda i, k: (i, 0, 0)),
        scratch_shapes=[
            pltpu.VMEM((bn, C, 128), jnp.float32),   # per-lane partial sums
            pltpu.VMEM((bn, C, 128), jnp.float32),   # per-lane partial maxes
        ],
        compiler_params=pltpu.CompilerParams(
            dimension_semantics=("parallel", "arbitrary"),
            vmem_limit_bytes=vmem_bytes,
        ),
        cost_estimate=cost,
    )(x_blk, w1t, w2t)

    return out.reshape(N, C, 1, 1)


def channel_attention_ref(x, w1, w2):
    """Pure-JAX reference mirroring the PyTorch forward."""
    avg = jnp.mean(x, axis=(2, 3))  # (N, C)
    mx = jnp.max(x, axis=(2, 3))    # (N, C)

    def fc(p):
        return jnp.maximum(p @ w1.T, 0.0) @ w2.T

    return jax.nn.sigmoid(fc(avg) + fc(mx)).reshape(x.shape[0], x.shape[1], 1, 1)


if __name__ == "__main__":
    # ChannelAttention(in_planes=32, ratio=16): fc = Conv2d(32,2,1) -> ReLU -> Conv2d(2,32,1)
    N, C = 2, 32
    ratio = 16
    Cr = C // ratio

    key = jax.random.PRNGKey(0)
    kx1, k1, k2, kx2, kx3 = jax.random.split(key, 5)

    # 1x1 conv kernels squeezed to 2-D (deterministic synthetic weights).
    w1 = jax.random.normal(k1, (Cr, C), dtype=jnp.float32) * 0.1
    w2 = jax.random.normal(k2, (C, Cr), dtype=jnp.float32) * 0.1

    def check(x, **kw):
        out = jax.block_until_ready(channel_attention(x, w1, w2, **kw))
        ref = channel_attention_ref(x, w1, w2)
        assert out.shape == (x.shape[0], C, 1, 1)
        assert jnp.allclose(out, ref, atol=1e-5, rtol=1e-5), \
            float(jnp.max(jnp.abs(out - ref)))

    # 1) 16x16: auto tile -> single chunk per batch block, two batch blocks
    #    (megacore-friendly); also force tile_hw=128 to exercise the
    #    multi-chunk (no-tail) accumulation path.
    x1 = jax.random.normal(kx1, (N, C, 16, 16), dtype=jnp.float32)
    check(x1)
    check(x1, tile_hw=128)

    # 2) Ragged 13x13 = 169 lanes: single non-lane-aligned chunk (narrow slice).
    x2 = jax.random.normal(kx2, (N, C, 13, 13), dtype=jnp.float32)
    check(x2)

    # 3) 50x50 = 2500 lanes with a 512-lane tile: deep reduction with a masked
    #    tail slice and the triple-buffered x stream.
    x3 = jax.random.normal(kx3, (N, C, 50, 50), dtype=jnp.float32)
    check(x3, tile_hw=512)

    print("KERNEL_OK")
</pallas_src>

<mosaic_0001>
module attributes {stable_mosaic.version = 11 : i64} {
  func.func @channel_attention_kernel(%arg0: i32, %arg1: i32, %arg2: memref<1x1x32x256xf32, #tpu.memory_space<vmem>>, %arg3: memref<32x2xf32, #tpu.memory_space<vmem>>, %arg4: memref<2x32xf32, #tpu.memory_space<vmem>>, %arg5: memref<1x1x32xf32, #tpu.memory_space<vmem>>, %arg6: memref<1x32x128xf32, #tpu.memory_space<vmem>>, %arg7: memref<1x32x128xf32, #tpu.memory_space<vmem>>) attributes {dimension_semantics = [#tpu.dimension_semantics<parallel>, #tpu.dimension_semantics<arbitrary>], iteration_bounds = array<i64: 2, 1>, scalar_prefetch = 0 : i64, scratch_operands = 2 : i64, tpu.core_type = #tpu.core_type<tc>, window_params = [{transform_indices = @transform_0, window_bounds = array<i64: 1, 1, 32, 256>}, {pipeline_mode = #tpu.pipeline_mode<synchronous>, transform_indices = @transform_1, window_bounds = array<i64: 32, 2>}, {pipeline_mode = #tpu.pipeline_mode<synchronous>, transform_indices = @transform_2, window_bounds = array<i64: 2, 32>}, {transform_indices = @transform_3, window_bounds = array<i64: 1, 1, 32>}]} {
    %c0_i32 = arith.constant 0 : i32
    %0 = arith.cmpi eq, %arg1, %c0_i32 : i32
    %1 = arith.extui %0 : i1 to i32
    %c0_i32_0 = arith.constant 0 : i32
    %2 = arith.cmpi ne, %1, %c0_i32_0 : i32
    scf.if %2 {
      %cst = arith.constant 0.000000e+00 : f32
      %22 = vector.broadcast %cst : f32 to vector<1x32x128xf32>
      %c0_33 = arith.constant 0 : index
      %c0_34 = arith.constant 0 : index
      %c0_35 = arith.constant 0 : index
      %23 = vector.load %arg6[%c0_33, %c0_34, %c0_35] : memref<1x32x128xf32, #tpu.memory_space<vmem>>, vector<1x32x128xf32>
      tpu.vector_store %arg6[%c0_33, %c0_34, %c0_35], %22 {strides = array<i32>} : memref<1x32x128xf32, #tpu.memory_space<vmem>>, vector<1x32x128xf32>,
      %cst_36 = arith.constant 0xFF800000 : f32
      %24 = vector.broadcast %cst_36 : f32 to vector<1x32x128xf32>
      %c0_37 = arith.constant 0 : index
      %c0_38 = arith.constant 0 : index
      %c0_39 = arith.constant 0 : index
      %25 = vector.load %arg7[%c0_37, %c0_38, %c0_39] : memref<1x32x128xf32, #tpu.memory_space<vmem>>, vector<1x32x128xf32>
      tpu.vector_store %arg7[%c0_37, %c0_38, %c0_39], %24 {strides = array<i32>} : memref<1x32x128xf32, #tpu.memory_space<vmem>>, vector<1x32x128xf32>,
    } else {
    }
    %c0 = arith.constant 0 : index
    %c0_1 = arith.constant 0 : index
    %c0_2 = arith.constant 0 : index
    %c0_3 = arith.constant 0 : index
    %3 = vector.load %arg2[%c0, %c0_1, %c0_2, %c0_3] : memref<1x1x32x256xf32, #tpu.memory_space<vmem>>, vector<1x1x32x128xf32>
    %4 = vector.shape_cast %3 : vector<1x1x32x128xf32> to vector<1x32x128xf32>
    %c0_4 = arith.constant 0 : index
    %c0_5 = arith.constant 0 : index
    %c0_6 = arith.constant 0 : index
    %5 = vector.load %arg6[%c0_4, %c0_5, %c0_6] : memref<1x32x128xf32, #tpu.memory_space<vmem>>, vector<1x32x128xf32>
    %6 = arith.addf %5, %4 : vector<1x32x128xf32>
    %c0_7 = arith.constant 0 : index
    %c0_8 = arith.constant 0 : index
    %c0_9 = arith.constant 0 : index
    %7 = vector.load %arg6[%c0_7, %c0_8, %c0_9] : memref<1x32x128xf32, #tpu.memory_space<vmem>>, vector<1x32x128xf32>
    tpu.vector_store %arg6[%c0_7, %c0_8, %c0_9], %6 {strides = array<i32>} : memref<1x32x128xf32, #tpu.memory_space<vmem>>, vector<1x32x128xf32>,
    %c0_10 = arith.constant 0 : index
    %c0_11 = arith.constant 0 : index
    %c0_12 = arith.constant 0 : index
    %8 = vector.load %arg7[%c0_10, %c0_11, %c0_12] : memref<1x32x128xf32, #tpu.memory_space<vmem>>, vector<1x32x128xf32>
    %9 = arith.maximumf %8, %4 : vector<1x32x128xf32>
    %c0_13 = arith.constant 0 : index
    %c0_14 = arith.constant 0 : index
    %c0_15 = arith.constant 0 : index
    %10 = vector.load %arg7[%c0_13, %c0_14, %c0_15] : memref<1x32x128xf32, #tpu.memory_space<vmem>>, vector<1x32x128xf32>
    tpu.vector_store %arg7[%c0_13, %c0_14, %c0_15], %9 {strides = array<i32>} : memref<1x32x128xf32, #tpu.memory_space<vmem>>, vector<1x32x128xf32>,
    %c0_16 = arith.constant 0 : index
    %c0_17 = arith.constant 0 : index
    %c0_18 = arith.constant 0 : index
    %c128 = arith.constant 128 : index
    %11 = vector.load %arg2[%c0_16, %c0_17, %c0_18, %c128] : memref<1x1x32x256xf32, #tpu.memory_space<vmem>>, vector<1x1x32x128xf32>
    %12 = vector.shape_cast %11 : vector<1x1x32x128xf32> to vector<1x32x128xf32>
    %c0_19 = arith.constant 0 : index
    %c0_20 = arith.constant 0 : index
    %c0_21 = arith.constant 0 : index
    %13 = vector.load %arg6[%c0_19, %c0_20, %c0_21] : memref<1x32x128xf32, #tpu.memory_space<vmem>>, vector<1x32x128xf32>
    %14 = arith.addf %13, %12 : vector<1x32x128xf32>
    %c0_22 = arith.constant 0 : index
    %c0_23 = arith.constant 0 : index
    %c0_24 = arith.constant 0 : index
    %15 = vector.load %arg6[%c0_22, %c0_23, %c0_24] : memref<1x32x128xf32, #tpu.memory_space<vmem>>, vector<1x32x128xf32>
    tpu.vector_store %arg6[%c0_22, %c0_23, %c0_24], %14 {strides = array<i32>} : memref<1x32x128xf32, #tpu.memory_space<vmem>>, vector<1x32x128xf32>,
    %c0_25 = arith.constant 0 : index
    %c0_26 = arith.constant 0 : index
    %c0_27 = arith.constant 0 : index
    %16 = vector.load %arg7[%c0_25, %c0_26, %c0_27] : memref<1x32x128xf32, #tpu.memory_space<vmem>>, vector<1x32x128xf32>
    %17 = arith.maximumf %16, %12 : vector<1x32x128xf32>
    %c0_28 = arith.constant 0 : index
    %c0_29 = arith.constant 0 : index
    %c0_30 = arith.constant 0 : index
    %18 = vector.load %arg7[%c0_28, %c0_29, %c0_30] : memref<1x32x128xf32, #tpu.memory_space<vmem>>, vector<1x32x128xf32>
    tpu.vector_store %arg7[%c0_28, %c0_29, %c0_30], %17 {strides = array<i32>} : memref<1x32x128xf32, #tpu.memory_space<vmem>>, vector<1x32x128xf32>,
    %c0_i32_31 = arith.constant 0 : i32
    %19 = arith.cmpi eq, %arg1, %c0_i32_31 : i32
    %20 = arith.extui %19 : i1 to i32
    %c0_i32_32 = arith.constant 0 : i32
    %21 = arith.cmpi ne, %20, %c0_i32_32 : i32
    scf.if %21 {
      %c0_33 = arith.constant 0 : index
      %c0_34 = arith.constant 0 : index
      %c0_35 = arith.constant 0 : index
      %22 = vector.load %arg6[%c0_33, %c0_34, %c0_35] : memref<1x32x128xf32, #tpu.memory_space<vmem>>, vector<1x32x128xf32>
      %cst = arith.constant dense<0.000000e+00> : vector<1x32xf32>
      %23 = vector.multi_reduction <add>, %22, %cst [2] : vector<1x32x128xf32> to vector<1x32xf32>
      %cst_36 = arith.constant 3.906250e-03 : f32
      %24 = vector.broadcast %cst_36 : f32 to vector<1x32xf32>
      %25 = arith.mulf %23, %24 : vector<1x32xf32>
      %c0_37 = arith.constant 0 : index
      %c0_38 = arith.constant 0 : index
      %c0_39 = arith.constant 0 : index
      %26 = vector.load %arg7[%c0_37, %c0_38, %c0_39] : memref<1x32x128xf32, #tpu.memory_space<vmem>>, vector<1x32x128xf32>
      %cst_40 = arith.constant dense<0xFF800000> : vector<1x32xf32>
      %27 = vector.multi_reduction <maximumf>, %26, %cst_40 [2] : vector<1x32x128xf32> to vector<1x32xf32>
      %28 = tpu.concatenate %25, %27 in 0 : vector<1x32xf32>, vector<1x32xf32> -> vector<2x32xf32>
      %c0_41 = arith.constant 0 : index
      %c0_42 = arith.constant 0 : index
      %29 = vector.load %arg3[%c0_41, %c0_42] : memref<32x2xf32, #tpu.memory_space<vmem>>, vector<32x2xf32>
      %cst_43 = arith.constant dense<0.000000e+00> : vector<2x2xf32>
      %30 = tpu.matmul %28, %29, %cst_43 {dimension_numbers = #tpu.dot_dimension_numbers<[1], [0], [0], [1], [0, 0, 1, 1], [], []>} : vector<2x32xf32>, vector<32x2xf32>, vector<2x2xf32> -> vector<2x2xf32>
      %cst_44 = arith.constant 0.000000e+00 : f32
      %31 = vector.broadcast %cst_44 : f32 to vector<2x2xf32>
      %32 = arith.maximumf %30, %31 : vector<2x2xf32>
      %c0_45 = arith.constant 0 : index
      %c0_46 = arith.constant 0 : index
      %33 = vector.load %arg4[%c0_45, %c0_46] : memref<2x32xf32, #tpu.memory_space<vmem>>, vector<2x32xf32>
      %cst_47 = arith.constant dense<0.000000e+00> : vector<2x32xf32>
      %34 = tpu.matmul %32, %33, %cst_47 {dimension_numbers = #tpu.dot_dimension_numbers<[1], [0], [0], [1], [0, 0, 1, 1], [], []>} : vector<2x2xf32>, vector<2x32xf32>, vector<2x32xf32> -> vector<2x32xf32>
      %35 = vector.extract_strided_slice %34 {offsets = [0, 0], sizes = [1, 32], strides = [1, 1]} : vector<2x32xf32> to vector<1x32xf32>
      %36 = vector.extract_strided_slice %34 {offsets = [1, 0], sizes = [1, 32], strides = [1, 1]} : vector<2x32xf32> to vector<1x32xf32>
      %37 = arith.addf %35, %36 : vector<1x32xf32>
      %38 = arith.negf %37 : vector<1x32xf32>
      %39 = math.exp %38 : vector<1x32xf32>
      %cst_48 = arith.constant 1.000000e+00 : f32
      %40 = vector.broadcast %cst_48 : f32 to vector<1x32xf32>
      %41 = arith.addf %40, %39 : vector<1x32xf32>
      %42 = arith.divf %40, %41 : vector<1x32xf32>
      %c0_49 = arith.constant 0 : index
      %c0_50 = arith.constant 0 : index
      %c0_51 = arith.constant 0 : index
      %43 = vector.load %arg5[%c0_49, %c0_50, %c0_51] : memref<1x1x32xf32, #tpu.memory_space<vmem>>, vector<1x1x32xf32>
      %44 = vector.shape_cast %43 : vector<1x1x32xf32> to vector<1x32xf32>
      %45 = vector.shape_cast %42 : vector<1x32xf32> to vector<1x1x32xf32>
      tpu.vector_store %arg5[%c0_49, %c0_50, %c0_51], %45 {strides = array<i32>} : memref<1x1x32xf32, #tpu.memory_space<vmem>>, vector<1x1x32xf32>,
    } else {
    }
    return
  }
  func.func @transform_0(%arg0: i32, %arg1: i32) -> (i32, i32, i32, i32) {
    %c0_i32 = arith.constant 0 : i32
    %c0_i32_0 = arith.constant 0 : i32
    %c0_i32_1 = arith.constant 0 : i32
    return %arg0, %c0_i32, %c0_i32_0, %arg1 : i32, i32, i32, i32
  }
  func.func @transform_1(%arg0: i32, %arg1: i32) -> (i32, i32) {
    %c0_i32 = arith.constant 0 : i32
    %c0_i32_0 = arith.constant 0 : i32
    %c0_i32_1 = arith.constant 0 : i32
    return %c0_i32, %c0_i32_0 : i32, i32
  }
  func.func @transform_2(%arg0: i32, %arg1: i32) -> (i32, i32) {
    %c0_i32 = arith.constant 0 : i32
    %c0_i32_0 = arith.constant 0 : i32
    %c0_i32_1 = arith.constant 0 : i32
    return %c0_i32, %c0_i32_0 : i32, i32
  }
  func.func @transform_3(%arg0: i32, %arg1: i32) -> (i32, i32, i32) {
    %c0_i32 = arith.constant 0 : i32
    %c0_i32_0 = arith.constant 0 : i32
    %c0_i32_1 = arith.constant 0 : i32
    return %arg0, %c0_i32, %c0_i32_0 : i32, i32, i32
  }
}

</mosaic_0001>

<llo_original>
// kernel: tpu_custom_call.1
$region0: #{tpu_custom_call.1}
  #allocation0 [shape = 'u32[]', space=smem, size = 0x4, offset = 0x4, fixed_abs, tag = 'smem constant byte address 0x4 - core index']
  #allocation1 [shape = 'u32[144,128]{1,0:T(1,128)}', space=vmem, size = 0x12000, scoped, tag = 'internal scratch']
  #allocation2 [shape = 'f32[1,32,128]{2,1,0:T(8,128)}', space=vmem, size = 0x4000, scoped, tag = 'scratch operand']
  #allocation3 [shape = 'f32[1,32,128]{2,1,0:T(8,128)}', space=vmem, size = 0x4000, scoped, tag = 'scratch operand']
  %s0 = inlined_call_operand.hbm [shape: f32[2,1,32,256], index: 0, kind: input, shape index: {}]
  %s1 = inlined_call_operand.vmem [shape: f32[32,2], index: 1, kind: input, shape index: {}]
  %s2 = inlined_call_operand.vmem [shape: f32[2,32], index: 2, kind: input, shape index: {}]
  %s3 = inlined_call_operand.hbm [shape: f32[2,1,32], index: 3, kind: output, shape index: {}]
  %s4 = sld [smem:[#allocation0]]
  $region57: #{tpu_custom_call.1} parent=0
    _
  %s6 = ssub.s32 1, %s4
  %s7 = scalar_select 0, %s6, %s4
  $region1: #{tpu_custom_call.1} parent=0
    #allocation4 [shape = 'u8[65536]{0}', space=vmem, size = 0x10000, scoped, tag = 'input window, operand 0']
    #allocation5 [shape = 's32[2]{0}', space=sflag, size = 0x8, scoped, tag = 'scoped memory for tpu_custom_call.1']
    #allocation6 [shape = 's32[2]{0}', space=sflag, size = 0x8, scoped, tag = 'scoped memory for tpu_custom_call.1']
    #allocation7 [shape = 'u8[1024]{0}', space=vmem, size = 0x400, scoped, tag = 'output window, operand 0']
    %8 = vsyncpa [#allocation5], 0
    %s9 = scalar_lea.sflag [#allocation5], 1
    %10 = vsyncpa %s9, 0
    %11 = vsyncpa [#allocation6], 0
    %s12 = scalar_lea.sflag [#allocation6], 1
    %13 = vsyncpa %s12, 0
    loop: start=0, step=1, limit=4
    $region2: #{tpu_custom_call.1} parent=1 // loop_pre_header
      _
    $region3: #{tpu_custom_call.1} parent=1 // loop_header
      %s15 = sphi 0, %s19
      %p16 = scmp.ge.s32.totalorder %s15, 4
      %s22 = sphi 0, %s34
      %s23 = sphi 0, %s30
      %s24 = sphi 0, %s22
      %s25 = sphi 0, %s23
      %s26 = sphi 0, %s24
      %s27 = sphi 0, %s25
      %s39 = sphi 0, %s41
      %s42 = sphi 0, %s39
      %s43 = sphi 0, %s42
      %s59 = sphi 0, %s43
      %s63 = sphi 0, %s63
      %s65 = sphi 0, %s63
      %s66 = sphi 0, %s65
      %s80 = sphi 0, %s66
      %s84 = sphi 0, %s84
      %s86 = sphi 0, %s84
      %s87 = sphi 0, %s86
      %s101 = sphi 0, %s87
      %s107 = sphi 0, %s109
      %s110 = sphi 0, %s107
      %s111 = sphi 0, %s110
      %s127 = sphi 0, %s111
    $region4: #{tpu_custom_call.1} parent=1 // loop_header_branch
      %18 = sbr.rel (%p16) target = $region8
    $region5: #{tpu_custom_call.1} parent=1 // loop_body
      %s20 = ssub.s32 %s15, 1
      %s21 = ssub.s32 %s15, 2
      %s28 = sadd.s32 1, %s23
      %p29 = scmp.ge.s32.totalorder %s28, 1
      %s30 = scalar_select %p29, 0, %s28
      %s31 = sadd.s32 1, %s22
      %s32 = scalar_select %p29, %s31, %s22
      %p33 = scmp.ge.s32.totalorder %s32, 2
      %s34 = scalar_select %p33, 0, %s32
      %s35 = ssub.s32 %s22, %s34
      %s36 = ssub.s32 %s23, %s30
      %s37 = sor.u32 %s35, %s36
      %p38 = scmp.eq.s32.totalorder %s37, 0
      %s40 = sadd.s32 %s39, 1
      %s41 = scalar_select %p38, %s39, %s40
      %p44 = pneg %p38
      %p45 = scmp.eq.s32.totalorder %s15, 1
      %p46 = por %p44, %p45
      %p47 = scmp.ne.s32.totalorder %s39, %s42
      %p48 = scmp.eq.s32.totalorder %s15, 0
      %p49 = por %p47, %p48
      %p50 = scmp.ne.s32.totalorder %s39, %s42
      %p51 = scmp.eq.s32.totalorder %s20, 1
      %p52 = por %p50, %p51
      %p53 = scmp.ne.s32.totalorder %s42, %s43
      %p54 = scmp.eq.s32.totalorder %s20, 0
      %p55 = por %p53, %p54
      %p56 = scmp.ne.s32.totalorder %s42, %s43
      %p57 = scmp.eq.s32.totalorder %s21, 1
      %p58 = por %p56, %p57
      %p60 = scmp.ne.s32.totalorder %s43, %s59
      %p61 = scmp.eq.s32.totalorder %s21, 0
      %p62 = por %p60, %p61
      %s64 = sadd.s32 %s63, 1
      %p67 = scmp.eq.s32.totalorder %s15, 1
      %p68 = scmp.ne.s32.totalorder %s63, %s65
      %p69 = scmp.eq.s32.totalorder %s15, 0
      %p70 = por %p68, %p69
      %p71 = scmp.ne.s32.totalorder %s63, %s65
      %p72 = scmp.eq.s32.totalorder %s20, 1
      %p73 = por %p71, %p72
      %p74 = scmp.ne.s32.totalorder %s65, %s66
      %p75 = scmp.eq.s32.totalorder %s20, 0
      %p76 = por %p74, %p75
      %p77 = scmp.ne.s32.totalorder %s65, %s66
      %p78 = scmp.eq.s32.totalorder %s21, 1
      %p79 = por %p77, %p78
      %p81 = scmp.ne.s32.totalorder %s66, %s80
      %p82 = scmp.eq.s32.totalorder %s21, 0
      %p83 = por %p81, %p82
      %s85 = sadd.s32 %s84, 1
      %p88 = scmp.eq.s32.totalorder %s15, 1
      %p89 = scmp.ne.s32.totalorder %s84, %s86
      %p90 = scmp.eq.s32.totalorder %s15, 0
      %p91 = por %p89, %p90
      %p92 = scmp.ne.s32.totalorder %s84, %s86
      %p93 = scmp.eq.s32.totalorder %s20, 1
      %p94 = por %p92, %p93
      %p95 = scmp.ne.s32.totalorder %s86, %s87
      %p96 = scmp.eq.s32.totalorder %s20, 0
      %p97 = por %p95, %p96
      %p98 = scmp.ne.s32.totalorder %s86, %s87
      %p99 = scmp.eq.s32.totalorder %s21, 1
      %p100 = por %p98, %p99
      %p102 = scmp.ne.s32.totalorder %s87, %s101
      %p103 = scmp.eq.s32.totalorder %s21, 0
      %p104 = por %p102, %p103
      %s105 = ssub.s32 %s22, %s34
      %p106 = scmp.eq.s32.totalorder %s105, 0
      %s108 = sadd.s32 %s107, 1
      %s109 = scalar_select %p106, %s107, %s108
      %p112 = pneg %p106
      %p113 = scmp.eq.s32.totalorder %s15, 1
      %p114 = por %p112, %p113
      %p115 = scmp.ne.s32.totalorder %s107, %s110
      %p116 = scmp.eq.s32.totalorder %s15, 0
      %p117 = por %p115, %p116
      %p118 = scmp.ne.s32.totalorder %s107, %s110
      %p119 = scmp.eq.s32.totalorder %s20, 1
      %p120 = por %p118, %p119
      %p121 = scmp.ne.s32.totalorder %s110, %s111
      %p122 = scmp.eq.s32.totalorder %s20, 0
      %p123 = por %p121, %p122
      %p124 = scmp.ne.s32.totalorder %s110, %s111
      %p125 = scmp.eq.s32.totalorder %s21, 1
      %p126 = por %p124, %p125
      %p128 = scmp.ne.s32.totalorder %s111, %s127
      %p129 = scmp.eq.s32.totalorder %s21, 0
      %p130 = por %p128, %p129
      %p131 = scmp.le.s32.totalorder 1, %s15
      %p132 = scmp.lt.s32.totalorder %s15, 3
      %p133 = pnand %p131, %p132
      %p134 = pneg %p133
      // Predicated region
      $region9: #{tpu_custom_call.1} parent=5 // pred_check
        _
      $region10: #{tpu_custom_call.1} parent=5 // pred_check_branch
        %136 = sbr.rel (%p133) target = $region12
      $region11: #{tpu_custom_call.1} parent=5 // pred_region
        %s137 = ssub.s32 %s15, 1
        // Predicated region
        $region13: #{tpu_custom_call.1} parent=11 // pred_check
          %p138 = pneg %p76
        $region14: #{tpu_custom_call.1} parent=11 // pred_check_branch
          %140 = sbr.rel (%p138) target = $region16
        $region15: #{tpu_custom_call.1} parent=11 // pred_region
          _
        $region16: #{tpu_custom_call.1} parent=11 // pred_fallthru
          _
        // Predicated region
        $region17: #{tpu_custom_call.1} parent=11 // pred_check
          %p141 = pneg %p97
        $region18: #{tpu_custom_call.1} parent=11 // pred_check_branch
          %143 = sbr.rel (%p141) target = $region20
        $region19: #{tpu_custom_call.1} parent=11 // pred_region
          _
        $region20: #{tpu_custom_call.1} parent=11 // pred_fallthru
          _
      $region12: #{tpu_custom_call.1} parent=5 // pred_fallthru
        _
      %p144 = scmp.lt.s32.totalorder %s15, 2
      // Predicated region
      $region21: #{tpu_custom_call.1} parent=5 // pred_check
        %p145 = pneg %p144
      $region22: #{tpu_custom_call.1} parent=5 // pred_check_branch
        %147 = sbr.rel (%p145) target = $region24
      $region23: #{tpu_custom_call.1} parent=5 // pred_region
        // Predicated region
        $region25: #{tpu_custom_call.1} parent=23 // pred_check
          %p148 = pneg %p49
        $region26: #{tpu_custom_call.1} parent=23 // pred_check_branch
          %150 = sbr.rel (%p148) target = $region28
        $region27: #{tpu_custom_call.1} parent=23 // pred_region
          %s151 = sand.u32 %s39, 1
          %s152 = scalar_lea.sflag [#allocation5], %s151
          %s153 = sand.u32 %s39, 1
          %s154 = smul.addr %s153, 64
          %s155 = scalar_lea.vmem [#allocation4], %s154
          %s156 = smul.u32 2, %s23
          %s158 = ssub.s32 1024, 1024
          %159 = vsyncadd %s152, %s158
          %s160 = smul.addr %s22, 8
          %s161 = sadd.s32 %s156, %s160
          %s162 = smul.addr %s161, 128
          %s163 = scalar_lea.hbm %s0, %s162
          %s164 = sshll.u32 %s155, 4
          %s165 = int_to_ptr.vmem [resolvable:$true] %s164
          %170 = dma.hbm_to_vmem [thread:$0]  %s163, 1024, %s165, %s152, 256, 256, 16
        $region28: #{tpu_custom_call.1} parent=23 // pred_fallthru
          _
      $region24: #{tpu_custom_call.1} parent=5 // pred_fallthru
        _
      %p171 = scmp.le.s32.totalorder 1, %s15
      %p172 = scmp.lt.s32.totalorder %s15, 3
      %p173 = pnand %p171, %p172
      %p174 = pneg %p173
      // Predicated region
      $region29: #{tpu_custom_call.1} parent=5 // pred_check
        _
      $region30: #{tpu_custom_call.1} parent=5 // pred_check_branch
        %176 = sbr.rel (%p173) target = $region32
      $region31: #{tpu_custom_call.1} parent=5 // pred_region
        %s177 = ssub.s32 %s15, 1
        %s178 = sand.u32 %s42, 1
        %s179 = scalar_lea.sflag [#allocation5], %s178
        %s180 = sand.u32 %s42, 1
        %s181 = smul.addr %s180, 64
        %s182 = scalar_lea.vmem [#allocation4], %s181
        // Predicated region
        $region33: #{tpu_custom_call.1} parent=31 // pred_check
          %p183 = pneg %p55
        $region34: #{tpu_custom_call.1} parent=31 // pred_check_branch
          %185 = sbr.rel (%p183) target = $region36
        $region35: #{tpu_custom_call.1} parent=31 // pred_region
          %186 = dma.done %s179, 1024
        $region36: #{tpu_custom_call.1} parent=31 // pred_fallthru
          _
        %s187 = sand.u32 %s42, 1
        %s188 = scalar_lea.sflag [#allocation5], %s187
        %s189 = sand.u32 %s42, 1
        %s190 = smul.addr %s189, 64
        %s191 = scalar_lea.vmem [#allocation4], %s190
        %p192 = pneg %p55
        %p193 = pneg %p52
        %p194 = pneg %p76
        %p195 = pneg %p73
        %p196 = pneg %p97
        %p197 = pneg %p94
        %p198 = pneg %p123
        %p199 = pneg %p120
        %s200 = sand.u32 %s110, 1
        %s201 = scalar_lea.sflag [#allocation6], %s200
        %s202 = sand.u32 %s110, 1
        %s203 = scalar_lea.vmem [#allocation7], %s202
        %s204 = smul.u32 2, %s25
        %p205 = scmp.eq.s32.totalorder %s25, 0
        // Predicated region
        $region37: #{tpu_custom_call.1} parent=31 // pred_check
          %p206 = pneg %p205
        $region38: #{tpu_custom_call.1} parent=31 // pred_check_branch
          %208 = sbr.rel (%p206) target = $region40
        $region39: #{tpu_custom_call.1} parent=31 // pred_region
          %209 = vst [vmem:[#allocation2] sm:$0xff] 0.0
          %210 = vst [vmem:[#allocation2 + $0x8] sm:$0xff] 0.0
          %211 = vst [vmem:[#allocation2 + $0x10] sm:$0xff] 0.0
          %212 = vst [vmem:[#allocation2 + $0x18] sm:$0xff] 0.0
          %213 = vst [vmem:[#allocation3] sm:$0xff] -inf
          %214 = vst [vmem:[#allocation3 + $0x8] sm:$0xff] -inf
          %215 = vst [vmem:[#allocation3 + $0x10] sm:$0xff] -inf
          %216 = vst [vmem:[#allocation3 + $0x18] sm:$0xff] -inf
        $region40: #{tpu_custom_call.1} parent=31 // pred_fallthru
          _
        %v217 = vld [vmem:[%s182] sm:$0xff]
        %v218 = vld [vmem:[%s182 + $0x10] sm:$0xff]
        %v219 = vld [vmem:[%s182 + $0x20] sm:$0xff]
        %v220 = vld [vmem:[%s182 + $0x30] sm:$0xff]
        %v221 = vld [vmem:[#allocation2] sm:$0xff]
        %v222 = vld [vmem:[#allocation2 + $0x8] sm:$0xff]
        %v223 = vld [vmem:[#allocation2 + $0x10] sm:$0xff]
        %v224 = vld [vmem:[#allocation2 + $0x18] sm:$0xff]
        %v225 = vadd.f32 %v221, %v217
        %v226 = vadd.f32 %v222, %v218
        %v227 = vadd.f32 %v223, %v219
        %v228 = vadd.f32 %v224, %v220
        %229 = vst [vmem:[#allocation2] sm:$0xff] %v225
        %230 = vst [vmem:[#allocation2 + $0x8] sm:$0xff] %v226
        %231 = vst [vmem:[#allocation2 + $0x10] sm:$0xff] %v227
        %232 = vst [vmem:[#allocation2 + $0x18] sm:$0xff] %v228
        %v233 = vld [vmem:[#allocation3] sm:$0xff]
        %v234 = vld [vmem:[#allocation3 + $0x8] sm:$0xff]
        %v235 = vld [vmem:[#allocation3 + $0x10] sm:$0xff]
        %v236 = vld [vmem:[#allocation3 + $0x18] sm:$0xff]
        %v237 = vmax.f32 %v233, %v217
        %v238 = vmax.f32 %v234, %v218
        %v239 = vmax.f32 %v235, %v219
        %v240 = vmax.f32 %v236, %v220
        %241 = vst [vmem:[#allocation3] sm:$0xff] %v237
        %242 = vst [vmem:[#allocation3 + $0x8] sm:$0xff] %v238
        %243 = vst [vmem:[#allocation3 + $0x10] sm:$0xff] %v239
        %244 = vst [vmem:[#allocation3 + $0x18] sm:$0xff] %v240
        %v245 = vld [vmem:[%s182 + $0x8] sm:$0xff]
        %v246 = vld [vmem:[%s182 + $0x18] sm:$0xff]
        %v247 = vld [vmem:[%s182 + $0x28] sm:$0xff]
        %v248 = vld [vmem:[%s182 + $0x38] sm:$0xff]
        %v249 = vld [vmem:[#allocation2] sm:$0xff]
        %v250 = vld [vmem:[#allocation2 + $0x8] sm:$0xff]
        %v251 = vld [vmem:[#allocation2 + $0x10] sm:$0xff]
        %v252 = vld [vmem:[#allocation2 + $0x18] sm:$0xff]
        %v253 = vadd.f32 %v249, %v245
        %v254 = vadd.f32 %v250, %v246
        %v255 = vadd.f32 %v251, %v247
        %v256 = vadd.f32 %v252, %v248
        %257 = vst [vmem:[#allocation2] sm:$0xff] %v253
        %258 = vst [vmem:[#allocation2 + $0x8] sm:$0xff] %v254
        %259 = vst [vmem:[#allocation2 + $0x10] sm:$0xff] %v255
        %260 = vst [vmem:[#allocation2 + $0x18] sm:$0xff] %v256
        %v261 = vld [vmem:[#allocation3] sm:$0xff]
        %v262 = vld [vmem:[#allocation3 + $0x8] sm:$0xff]
        %v263 = vld [vmem:[#allocation3 + $0x10] sm:$0xff]
        %v264 = vld [vmem:[#allocation3 + $0x18] sm:$0xff]
        %v265 = vmax.f32 %v261, %v245
        %v266 = vmax.f32 %v262, %v246
        %v267 = vmax.f32 %v263, %v247
        %v268 = vmax.f32 %v264, %v248
        %269 = vst [vmem:[#allocation3] sm:$0xff] %v265
        %270 = vst [vmem:[#allocation3 + $0x8] sm:$0xff] %v266
        %271 = vst [vmem:[#allocation3 + $0x10] sm:$0xff] %v267
        %272 = vst [vmem:[#allocation3 + $0x18] sm:$0xff] %v268
        // Predicated region
        $region41: #{tpu_custom_call.1} parent=31 // pred_check
          %p273 = pneg %p205
        $region42: #{tpu_custom_call.1} parent=31 // pred_check_branch
          %275 = sbr.rel (%p273) target = $region44
        $region43: #{tpu_custom_call.1} parent=31 // pred_region
          %v276 = vld [vmem:[#allocation2] sm:$0xff]
          %v277 = vld [vmem:[#allocation2 + $0x8] sm:$0xff]
          %v278 = vld [vmem:[#allocation2 + $0x10] sm:$0xff]
          %v279 = vld [vmem:[#allocation2 + $0x18] sm:$0xff]
          %280 = vadd.xlane.f32.xlu0 %v276
          %v281 = vpop.xlane.xlu0 %280
          %282 = vadd.xlane.f32.xlu0 %v277
          %v283 = vpop.xlane.xlu0 %282
          %284 = vadd.xlane.f32.xlu0 %v278
          %v285 = vpop.xlane.xlu0 %284
          %286 = vadd.xlane.f32.xlu0 %v279
          %v287 = vpop.xlane.xlu0 %286
          %v288 = vmul.f32 %v281, 0.00390625
          %v289 = vmul.f32 %v283, 0.00390625
          %v290 = vmul.f32 %v285, 0.00390625
          %v291 = vmul.f32 %v287, 0.00390625
          %v292 = vld [vmem:[#allocation3] sm:$0xff]
          %v293 = vld [vmem:[#allocation3 + $0x8] sm:$0xff]
          %v294 = vld [vmem:[#allocation3 + $0x10] sm:$0xff]
          %v295 = vld [vmem:[#allocation3 + $0x18] sm:$0xff]
          %296 = vmax.xlane.f32.xlu0 %v292
          %v297 = vpop.xlane.xlu0 %296
          %298 = vmax.xlane.f32.xlu0 %v293
          %v299 = vpop.xlane.xlu0 %298
          %300 = vmax.xlane.f32.xlu0 %v294
          %v301 = vpop.xlane.xlu0 %300
          %302 = vmax.xlane.f32.xlu0 %v295
          %v303 = vpop.xlane.xlu0 %302
          %v308 = vlaneseq
          %v309 = vand.u32 %v308, 127
          %v310 = vlaneseq
          %v311 = vshrl.u32 %v310, 7
          %v312 = vsub.s32 %v309, %v311
          %v313 = vrot.slane %v288, %v312
          %v314 = vadd.s32 %v309, 4294967288
          %v315 = vlaneseq
          %v316 = vshrl.u32 %v315, 7
          %v317 = vsub.s32 %v314, %v316
          %v318 = vrot.slane %v289, %v317
          %vm319 = vcmask 130112
          %v320 = vsel %vm319, %v318, %v313
          %v321 = vadd.s32 %v309, 4294967280
          %v322 = vlaneseq
          %v323 = vshrl.u32 %v322, 7
          %v324 = vsub.s32 %v321, %v323
          %v325 = vrot.slane %v290, %v324
          %vm326 = vcmask 195712
          %v327 = vsel %vm326, %v325, %v320
          %v328 = vadd.s32 %v309, 4294967272
          %v329 = vlaneseq
          %v330 = vshrl.u32 %v329, 7
          %v331 = vsub.s32 %v328, %v330
          %v332 = vrot.slane %v291, %v331
          %vm333 = vcmask 261312
          %v334 = vsel %vm333, %v332, %v327
          %v340 = vlaneseq
          %v341 = vshrl.u32 %v340, 7
          %v342 = vsub.s32 %v309, %v341
          %v343 = vrot.slane %v297, %v342
          %v344 = vlaneseq
          %v345 = vshrl.u32 %v344, 7
          %v346 = vsub.s32 %v314, %v345
          %v347 = vrot.slane %v299, %v346
          %v348 = vsel %vm319, %v347, %v343
          %v349 = vlaneseq
          %v350 = vshrl.u32 %v349, 7
          %v351 = vsub.s32 %v321, %v350
          %v352 = vrot.slane %v301, %v351
          %v353 = vsel %vm326, %v352, %v348
          %v354 = vlaneseq
          %v355 = vshrl.u32 %v354, 7
          %v356 = vsub.s32 %v328, %v355
          %v357 = vrot.slane %v303, %v356
          %v358 = vsel %vm333, %v357, %v353
          %vm360 = vcmask 1040384
          %v361 = vsel %vm360, %v334, %v358
          %v362 = vld [vmem:[%s1] sm:$0xff]
          %v363 = vld [vmem:[%s1 + $0x8] sm:$0xff]
          %v364 = vld [vmem:[%s1 + $0x10] sm:$0xff]
          %v365 = vld [vmem:[%s1 + $0x18] sm:$0xff]
          %vm366 = vcmask 261120
          %v368 = vsel %vm366, %v361, 0
          %370 = vmatprep.subr.mxu0 0.0
          %371 = vmatpush1.msra.mxu0 0.0
          %372 = vmatprep.subr.mxu0 0.0
          %373 = vmatpush1.msra.mxu0 0.0
          %374 = vmatprep.subr.mxu0 0.0
          %375 = vmatpush1.msra.mxu0 0.0
          %376 = vmatprep.subr.mxu0 0.0
          %377 = vmatpush1.msra.mxu0 0.0
          %378 = vmatprep.subr.mxu0 0.0
          %379 = vmatpush1.msra.mxu0 0.0
          %380 = vmatprep.subr.mxu0 0.0
          %381 = vmatpush1.msra.mxu0 0.0
          %382 = vmatprep.subr.mxu0 0.0
          %383 = vmatpush1.msra.mxu0 0.0
          %384 = vmatprep.subr.mxu0 0.0
          %385 = vmatpush1.msra.mxu0 0.0
          %386 = vmatprep.subr.mxu0 0.0
          %387 = vmatpush1.msra.mxu0 0.0
          %388 = vmatprep.subr.mxu0 0.0
          %389 = vmatpush1.msra.mxu0 0.0
          %390 = vmatprep.subr.mxu0 0.0
          %391 = vmatpush1.msra.mxu0 0.0
          %392 = vmatprep.subr.mxu0 0.0
          %393 = vmatpush1.msra.mxu0 0.0
          %394 = vmatprep.subr.mxu0 0.0
          %395 = vmatpush1.msra.mxu0 %v365
          %396 = vmatprep.subr.mxu0 0.0
          %397 = vmatpush1.msra.mxu0 %v364
          %398 = vmatprep.subr.mxu0 0.0
          %399 = vmatpush1.msra.mxu0 %v363
          %400 = vmatprep.subr.mxu0 0.0
          %401 = vmatpush1.msra.mxu0 %v362
          %402 = vmatprep.subr.mxu0 0.0
          %403 = vmatpush2.msra.mxu0 0.0
          %404 = vmatprep.subr.mxu0 0.0
          %405 = vmatpush2.msra.mxu0 0.0
          %406 = vmatprep.subr.mxu0 0.0
          %407 = vmatpush2.msra.mxu0 0.0
          %408 = vmatprep.subr.mxu0 0.0
          %409 = vmatpush2.msra.mxu0 0.0
          %410 = vmatprep.subr.mxu0 0.0
          %411 = vmatpush2.msra.mxu0 0.0
          %412 = vmatprep.subr.mxu0 0.0
          %413 = vmatpush2.msra.mxu0 0.0
          %414 = vmatprep.subr.mxu0 0.0
          %415 = vmatpush2.msra.mxu0 0.0
          %416 = vmatprep.subr.mxu0 0.0
          %417 = vmatpush2.msra.mxu0 0.0
          %418 = vmatprep.subr.mxu0 0.0
          %419 = vmatpush2.msra.mxu0 0.0
          %420 = vmatprep.subr.mxu0 0.0
          %421 = vmatpush2.msra.mxu0 0.0
          %422 = vmatprep.subr.mxu0 0.0
          %423 = vmatpush2.msra.mxu0 0.0
          %424 = vmatprep.subr.mxu0 0.0
          %425 = vmatpush2.msra.mxu0 0.0
          %426 = vmatprep.subr.mxu0 0.0
          %427 = vmatpush2.msra.mxu0 0.0
          %428 = vmatprep.subr.mxu0 0.0
          %429 = vmatpush2.msra.mxu0 0.0
          %430 = vmatprep.subr.mxu0 0.0
          %431 = vmatpush2.msra.mxu0 0.0
          %432 = vmatprep.subr.mxu0 0.0
          %433 = vmatpush2.msra.mxu0 0.0
          %434 = vmatprep.mubr.f32.mxu0 0.0
          %435 = vmatmul.mubr.f32.gmra.mxu0 %v368
          %v436 = vpop.f32.mrf.mxu0
          %v437 = vadd.f32 0.0, %v436
          %v438 = vpop.f32.mrf.mxu0
          %439 = vdwg.mxu0
          %v440 = vmax.f32 %v437, 0.0
          %v441 = vld [vmem:[%s2] sm:$0x3]
          %vm442 = vcmask 15360
          %v444 = vsel %vm442, %v440, 0
          %vm446 = vcmask 1041408
          %v448 = vsel %vm446, %v441, 0
          %450 = vmatprep.subr.mxu0 0.0
          %451 = vmatpush1.msra.mxu0 0.0
          %452 = vmatprep.subr.mxu0 0.0
          %453 = vmatpush1.msra.mxu0 0.0
          %454 = vmatprep.subr.mxu0 0.0
          %455 = vmatpush1.msra.mxu0 0.0
          %456 = vmatprep.subr.mxu0 0.0
          %457 = vmatpush1.msra.mxu0 0.0
          %458 = vmatprep.subr.mxu0 0.0
          %459 = vmatpush1.msra.mxu0 0.0
          %460 = vmatprep.subr.mxu0 0.0
          %461 = vmatpush1.msra.mxu0 0.0
          %462 = vmatprep.subr.mxu0 0.0
          %463 = vmatpush1.msra.mxu0 0.0
          %464 = vmatprep.subr.mxu0 0.0
          %465 = vmatpush1.msra.mxu0 0.0
          %466 = vmatprep.subr.mxu0 0.0
          %467 = vmatpush1.msra.mxu0 0.0
          %468 = vmatprep.subr.mxu0 0.0
          %469 = vmatpush1.msra.mxu0 0.0
          %470 = vmatprep.subr.mxu0 0.0
          %471 = vmatpush1.msra.mxu0 0.0
          %472 = vmatprep.subr.mxu0 0.0
          %473 = vmatpush1.msra.mxu0 0.0
          %474 = vmatprep.subr.mxu0 0.0
          %475 = vmatpush1.msra.mxu0 0.0
          %476 = vmatprep.subr.mxu0 0.0
          %477 = vmatpush1.msra.mxu0 0.0
          %478 = vmatprep.subr.mxu0 0.0
          %479 = vmatpush1.msra.mxu0 0.0
          %480 = vmatprep.subr.mxu0 0.0
          %481 = vmatpush1.msra.mxu0 %v448
          %482 = vmatprep.subr.mxu0 0.0
          %483 = vmatpush2.msra.mxu0 0.0
          %484 = vmatprep.subr.mxu0 0.0
          %485 = vmatpush2.msra.mxu0 0.0
          %486 = vmatprep.subr.mxu0 0.0
          %487 = vmatpush2.msra.mxu0 0.0
          %488 = vmatprep.subr.mxu0 0.0
          %489 = vmatpush2.msra.mxu0 0.0
          %490 = vmatprep.subr.mxu0 0.0
          %491 = vmatpush2.msra.mxu0 0.0
          %492 = vmatprep.subr.mxu0 0.0
          %493 = vmatpush2.msra.mxu0 0.0
          %494 = vmatprep.subr.mxu0 0.0
          %495 = vmatpush2.msra.mxu0 0.0
          %496 = vmatprep.subr.mxu0 0.0
          %497 = vmatpush2.msra.mxu0 0.0
          %498 = vmatprep.subr.mxu0 0.0
          %499 = vmatpush2.msra.mxu0 0.0
          %500 = vmatprep.subr.mxu0 0.0
          %501 = vmatpush2.msra.mxu0 0.0
          %502 = vmatprep.subr.mxu0 0.0
          %503 = vmatpush2.msra.mxu0 0.0
          %504 = vmatprep.subr.mxu0 0.0
          %505 = vmatpush2.msra.mxu0 0.0
          %506 = vmatprep.subr.mxu0 0.0
          %507 = vmatpush2.msra.mxu0 0.0
          %508 = vmatprep.subr.mxu0 0.0
          %509 = vmatpush2.msra.mxu0 0.0
          %510 = vmatprep.subr.mxu0 0.0
          %511 = vmatpush2.msra.mxu0 0.0
          %512 = vmatprep.subr.mxu0 0.0
          %513 = vmatpush2.msra.mxu0 0.0
          %514 = vmatprep.mubr.f32.mxu0 0.0
          %515 = vmatmul.mubr.f32.gmra.mxu0 %v444
          %v516 = vpop.f32.mrf.mxu0
          %v517 = vadd.f32 0.0, %v516
          %v518 = vpop.f32.mrf.mxu0
          %519 = vdwg.mxu0
          %v521 = vrot.slane %v517, 1
          %v523 = vadd.f32 %v517, %v521
          %v524 = vxor.u32 %v523, 2147483648
          %v525 = vmul.f32 %v524, 1.442695
          %v526 = vpow.pop %v525
          %v527 = vadd.f32 %v526, 1.0
          %v528 = vrcp.pop %v527
          %v529 = vmul.f32 1.0, %v528
          %vm530 = vcmask 253952
          %531 = vst.msk [vmem:[%s203] sm:$0x1] %vm530, %v529
        $region44: #{tpu_custom_call.1} parent=31 // pred_fallthru
          _
        %s532 = sand.u32 %s110, 1
        %s533 = scalar_lea.sflag [#allocation6], %s532
        %s534 = sand.u32 %s110, 1
        %s535 = scalar_lea.vmem [#allocation7], %s534
        // Predicated region
        $region45: #{tpu_custom_call.1} parent=31 // pred_check
          %p536 = pneg %p120
        $region46: #{tpu_custom_call.1} parent=31 // pred_check_branch
          %538 = sbr.rel (%p536) target = $region48
        $region47: #{tpu_custom_call.1} parent=31 // pred_region
          %s540 = ssub.s32 16, 16
          %541 = vsyncadd %s533, %s540
          %s542 = smul.addr %s24, 16
          %s543 = scalar_lea.hbm %s3, %s542
          %s545 = sshll.u32 %s535, 4
          %s546 = int_to_ptr.vmem [resolvable:$true] %s545
          %548 = dma.vmem_to_hbm [thread:$0]  %s546, 16, %s543, %s533
        $region48: #{tpu_custom_call.1} parent=31 // pred_fallthru
          _
      $region32: #{tpu_custom_call.1} parent=5 // pred_fallthru
        _
      %p549 = scmp.le.s32.totalorder 2, %s15
      // Predicated region
      $region49: #{tpu_custom_call.1} parent=5 // pred_check
        %p550 = pneg %p549
      $region50: #{tpu_custom_call.1} parent=5 // pred_check_branch
        %552 = sbr.rel (%p550) target = $region52
      $region51: #{tpu_custom_call.1} parent=5 // pred_region
        %s553 = ssub.s32 %s15, 2
        // Predicated region
        $region53: #{tpu_custom_call.1} parent=51 // pred_check
          %p554 = pneg %p126
        $region54: #{tpu_custom_call.1} parent=51 // pred_check_branch
          %556 = sbr.rel (%p554) target = $region56
        $region55: #{tpu_custom_call.1} parent=51 // pred_region
          %s557 = sand.u32 %s111, 1
          %s558 = scalar_lea.sflag [#allocation6], %s557
          %s559 = sand.u32 %s111, 1
          %s560 = scalar_lea.vmem [#allocation7], %s559
          %561 = dma.done %s558, 16
        $region56: #{tpu_custom_call.1} parent=51 // pred_fallthru
          _
      $region52: #{tpu_custom_call.1} parent=5 // pred_fallthru
        _
    $region6: #{tpu_custom_call.1} parent=1 // loop_footer
      %s19 = sadd.s32 1, %s15
    $region7: #{tpu_custom_call.1} parent=1 // loop_footer_branch
      %14 = sbr.rel target = $region3
    $region8: #{tpu_custom_call.1} parent=1 // loop_exit
      _
    %562 = vsyncpa [#allocation5], 1
    %s563 = scalar_lea.sflag [#allocation5], 1
    %564 = vsyncpa %s563, 1
    %565 = vsyncpa [#allocation6], 1
    %s566 = scalar_lea.sflag [#allocation6], 1
    %567 = vsyncpa %s566, 1

</llo_original>
